<compile_context>
chip_gen: v6e
topology: v6e:2x2x1
jax: 0.10.0
libtpu: 0.0.40
codegen_flags: <defaults>
</compile_context>

<pallas_src>
import functools

import jax
import jax.numpy as jnp
from jax import lax
from jax.experimental import pallas as pl
from jax.experimental.pallas import tpu as pltpu


def _round_up(x: int, m: int) -> int:
    return (x + m - 1) // m * m


# ----------------------------------------------------------------------------
# Pallas kernel: one (D_pad, tn) column block of  G = X^T X, accumulated over
# the N (reduction) grid axis.
#   - grid = (J, K) = (D_pad // tn, N_pad // tile_n); axis 0 "parallel",
#     axis 1 "arbitrary" (reduction last).
#   - the streamed X tile is full-width; the right operand column block is a
#     lane-aligned VMEM slice of the same tile (no duplicate HBM DMA).
#   - cast to the compute dtype is fused in-kernel (VPU work under DMA shadow).
#   - contraction over dim 0 of both operands -> no in-kernel XLU transpose.
# ----------------------------------------------------------------------------
def _gram_kernel(x_ref, g_ref, *, tn, d_pad, compute_dtype):
    @pl.when(pl.program_id(1) == 0)
    def _():
        g_ref[...] = jnp.zeros_like(g_ref)

    x = x_ref[...].astype(compute_dtype)                       # (tile_n, d_pad)
    if tn == d_pad:
        xr = x                                                  # single column block
    else:
        col = pl.multiple_of(pl.program_id(0) * tn, 128)        # lane-aligned slice
        xr = x_ref[:, pl.ds(col, tn)].astype(compute_dtype)     # (tile_n, tn)

    g_ref[...] += lax.dot_general(
        x, xr,
        dimension_numbers=(((0,), (0,)), ((), ())),              # contract over N
        preferred_element_type=jnp.float32,
    )


def gram_matrix(x: jax.Array, *, compute_dtype=jnp.float32) -> jax.Array:
    """Returns X^T X in float32 (shape (d, d)). Zero-pads N and D internally."""
    n, d = x.shape
    in_itemsize = jnp.dtype(x.dtype).itemsize
    sub = 16 if in_itemsize == 2 else 8          # sublane packing (bf16 packs 16 rows)

    # Lane-dense output / full MXU columns.
    d_pad = _round_up(d, 128)

    # VMEM budget from the actual chip (~80% of physical, headroom for Mosaic).
    try:
        vmem_cap = int(pltpu.get_tpu_info().vmem_capacity_bytes)
    except Exception:  # pragma: no cover - conservative fallback
        vmem_cap = 64 << 20
    vmem_budget = int(vmem_cap * 0.8)

    # Output column-tile width: single block for small D; 256 (MXU width on
    # v6e/v7x) or 128 otherwise, kept within half the VMEM budget.
    if d_pad <= 512:
        tn = d_pad
    else:
        tn = 256 if d_pad % 256 == 0 else 128
        if tn == 256 and 2 * d_pad * 256 * 4 > vmem_budget // 2:
            tn = 128

    # N tile: target ~8 MiB per streamed input buffer, balanced to limit padding.
    target_rows = max(sub, ((8 << 20) // max(1, d_pad * in_itemsize)) // sub * sub)
    if n <= target_rows:
        tile_n = _round_up(n, sub)
    else:
        num_tiles = -(-n // target_rows)
        tile_n = _round_up(-(-n // num_tiles), sub)
    n_pad = _round_up(n, tile_n)

    if (n_pad, d_pad) != (n, d):
        x = jnp.pad(x, ((0, n_pad - n), (0, d_pad - d)))  # zero rows/cols: no effect on X^T X

    # 2x double-buffered streamed input tile + double-buffered resident output
    # block + headroom, clamped to the per-chip budget.
    needed = 2 * tile_n * d_pad * in_itemsize + 2 * d_pad * tn * 4 + (4 << 20)
    vmem_bytes = min(max(needed, 32 << 20), vmem_budget)

    kernel = functools.partial(
        _gram_kernel, tn=tn, d_pad=d_pad, compute_dtype=compute_dtype)

    g = pl.pallas_call(
        kernel,
        out_shape=jax.ShapeDtypeStruct((d_pad, d_pad), jnp.float32),
        grid_spec=pltpu.PrefetchScalarGridSpec(
            num_scalar_prefetch=0,
            grid=(d_pad // tn, n_pad // tile_n),
            in_specs=[pl.BlockSpec((tile_n, d_pad), lambda j, k: (k, 0))],
            out_specs=pl.BlockSpec((d_pad, tn), lambda j, k: (0, j)),
        ),
        compiler_params=pltpu.CompilerParams(
            dimension_semantics=("parallel", "arbitrary"),
            vmem_limit_bytes=vmem_bytes,
        ),
    )(x)
    return g[:d, :d]


# ----------------------------------------------------------------------------
# Wrapper: full SpectralVariance.forward semantics.
# ----------------------------------------------------------------------------
def spectral_variance(features: jax.Array, *, embed_dim: int, mode: int,
                      compute_dtype=jnp.float32):
    n, d = features.shape
    assert d == embed_dim

    # Hot-path matmul in Pallas (cast to compute dtype fused inside the kernel).
    # compute_dtype=bf16 is the fast-MXU path; default f32 for spectrum fidelity.
    gram = gram_matrix(features, compute_dtype=compute_dtype)

    # TODO(synk): the SVD / eigen-decomposition (iterative solver) has no clean
    # Pallas equivalent; done with XLA's eigvalsh on the D x D Gram matrix.
    eigvals = jnp.linalg.eigvalsh(gram)                 # ascending
    s = jnp.sqrt(jnp.clip(eigvals, 0.0))[::-1]          # descending singular values

    if mode != 0:
        s = s[abs(mode) - 1:]

    # Normalization + KL vs uniform: tiny elementwise/reduction -> plain JAX.
    p = s / jnp.sum(s)
    length = p.shape[0]
    u = jnp.float32(1.0 / length)

    if mode == 0:
        return p

    eps = jnp.finfo(jnp.float32).tiny
    p_safe = jnp.maximum(p, eps)                        # guard log(0) for rank-deficient X
    if mode < 0:
        # entropy(p, u) = sum p * log(p / u), with 0*log(0) := 0
        terms = jnp.where(p > 0, p * (jnp.log(p_safe) - jnp.log(u)), 0.0)
        return jnp.sum(terms)
    # entropy(u, p) = sum u * log(u / p)
    return jnp.sum(u * (jnp.log(u) - jnp.log(p_safe)))


# ----------------------------------------------------------------------------
# Pure-JAX reference (mirrors the torch/scipy code path).
# ----------------------------------------------------------------------------
def _reference(features, embed_dim, mode):
    s = jnp.linalg.svd(features.astype(jnp.float32), compute_uv=False)
    if mode != 0:
        s = s[abs(mode) - 1:]
    p = s / jnp.sum(s)
    u = jnp.ones_like(p) / p.shape[0]
    if mode < 0:
        return jnp.sum(p * jnp.log(p / u))
    if mode > 0:
        return jnp.sum(u * jnp.log(u / p))
    return p


if __name__ == "__main__":
    key = jax.random.PRNGKey(0)
    N, EMBED_DIM, MODE = 64, 16, 1
    features = jax.random.normal(key, (N, EMBED_DIM), dtype=jnp.float32)

    ref = _reference(features, EMBED_DIM, MODE)

    # Default f32 compute path: tight tolerance against the SVD reference.
    kl_f32 = spectral_variance(features, embed_dim=EMBED_DIM, mode=MODE,
                               compute_dtype=jnp.float32)
    kl_f32 = jax.block_until_ready(kl_f32)
    assert jnp.allclose(kl_f32, ref, atol=1e-3, rtol=1e-3), (kl_f32, ref)

    # Opt-in bf16 fast-MXU path (cast fused in-kernel): looser tolerance
    # (input quantization + sqrt(eigvalsh(X^T X)) condition-number squaring).
    kl_bf16 = spectral_variance(features, embed_dim=EMBED_DIM, mode=MODE,
                                compute_dtype=jnp.bfloat16)
    kl_bf16 = jax.block_until_ready(kl_bf16)
    assert jnp.allclose(kl_bf16, ref, atol=5e-2, rtol=5e-2), (kl_bf16, ref)

    print("KERNEL_OK")
</pallas_src>

<mosaic_0001>
module attributes {stable_mosaic.version = 11 : i64} {
  func.func @_gram_kernel(%arg0: i32, %arg1: i32, %arg2: memref<64x128xf32, #tpu.memory_space<vmem>>, %arg3: memref<128x128xf32, #tpu.memory_space<vmem>>) attributes {dimension_semantics = [#tpu.dimension_semantics<parallel>, #tpu.dimension_semantics<arbitrary>], iteration_bounds = array<i64: 1, 1>, scalar_prefetch = 0 : i64, scratch_operands = 0 : i64, tpu.core_type = #tpu.core_type<tc>, window_params = [{transform_indices = @transform_0, window_bounds = array<i64: 64, 128>}, {transform_indices = @transform_1, window_bounds = array<i64: 128, 128>}]} {
    %c0_i32 = arith.constant 0 : i32
    %0 = arith.cmpi eq, %arg1, %c0_i32 : i32
    %1 = arith.extui %0 : i1 to i32
    %c0_i32_0 = arith.constant 0 : i32
    %2 = arith.cmpi ne, %1, %c0_i32_0 : i32
    scf.if %2 {
      %cst_6 = arith.constant 0.000000e+00 : f32
      %8 = vector.broadcast %cst_6 : f32 to vector<128x128xf32>
      %c0_7 = arith.constant 0 : index
      %c0_8 = arith.constant 0 : index
      %9 = vector.load %arg3[%c0_7, %c0_8] : memref<128x128xf32, #tpu.memory_space<vmem>>, vector<128x128xf32>
      tpu.vector_store %arg3[%c0_7, %c0_8], %8 {strides = array<i32>} : memref<128x128xf32, #tpu.memory_space<vmem>>, vector<128x128xf32>,
    } else {
    }
    %c0 = arith.constant 0 : index
    %c0_1 = arith.constant 0 : index
    %3 = vector.load %arg2[%c0, %c0_1] : memref<64x128xf32, #tpu.memory_space<vmem>>, vector<64x128xf32>
    %c0_2 = arith.constant 0 : index
    %c0_3 = arith.constant 0 : index
    %4 = vector.load %arg3[%c0_2, %c0_3] : memref<128x128xf32, #tpu.memory_space<vmem>>, vector<128x128xf32>
    %cst = arith.constant dense<0.000000e+00> : vector<128x128xf32>
    %5 = tpu.matmul %3, %3, %cst {dimension_numbers = #tpu.dot_dimension_numbers<[0], [0], [1], [1], [0, 1, 1, 1], [], []>} : vector<64x128xf32>, vector<64x128xf32>, vector<128x128xf32> -> vector<128x128xf32>
    %6 = arith.addf %4, %5 : vector<128x128xf32>
    %c0_4 = arith.constant 0 : index
    %c0_5 = arith.constant 0 : index
    %7 = vector.load %arg3[%c0_4, %c0_5] : memref<128x128xf32, #tpu.memory_space<vmem>>, vector<128x128xf32>
    tpu.vector_store %arg3[%c0_4, %c0_5], %6 {strides = array<i32>} : memref<128x128xf32, #tpu.memory_space<vmem>>, vector<128x128xf32>,
    return
  }
  func.func @transform_0(%arg0: i32, %arg1: i32) -> (i32, i32) {
    %c0_i32 = arith.constant 0 : i32
    %c0_i32_0 = arith.constant 0 : i32
    return %arg1, %c0_i32 : i32, i32
  }
  func.func @transform_1(%arg0: i32, %arg1: i32) -> (i32, i32) {
    %c0_i32 = arith.constant 0 : i32
    %c0_i32_0 = arith.constant 0 : i32
    return %c0_i32, %arg0 : i32, i32
  }
}

</mosaic_0001>

<llo_original>
// kernel: tpu_custom_call.1
$region0: #{tpu_custom_call.1}
  #allocation0 [shape = 'u32[]', space=smem, size = 0x4, offset = 0x4, fixed_abs, tag = 'smem constant byte address 0x4 - core index']
  #allocation1 [shape = 'u32[144,128]{1,0:T(1,128)}', space=vmem, size = 0x12000, scoped, tag = 'internal scratch']
  %s0 = inlined_call_operand.hbm [shape: f32[64,128], index: 0, kind: input, shape index: {}]
  %s1 = inlined_call_operand.hbm [shape: f32[128,128], index: 1, kind: output, shape index: {}]
  %s2 = sld [smem:[#allocation0]]
  $region22: #{tpu_custom_call.1} parent=0
    _
  %s4 = ssub.s32 1, %s2
  %s5 = scalar_select 0, %s4, %s2
  $region1: #{tpu_custom_call.1} parent=0
    #allocation2 [shape = 'u8[32768]{0}', space=vmem, size = 0x8000, scoped, tag = 'input window, operand 0, single buffered']
    #allocation3 [shape = 's32[1]{0}', space=sflag, size = 0x4, scoped, tag = 'scoped memory for tpu_custom_call.1']
    #allocation4 [shape = 's32[1]{0}', space=sflag, size = 0x4, scoped, tag = 'scoped memory for tpu_custom_call.1']
    #allocation5 [shape = 'u8[65536]{0}', space=vmem, size = 0x10000, scoped, tag = 'output window, operand 0, single buffered']
    %6 = vsyncpa [#allocation3], 0
    %7 = vsyncpa [#allocation4], 0
    // Predicated region
    $region2: #{tpu_custom_call.1} parent=1 // pred_check
      _
    $region3: #{tpu_custom_call.1} parent=1 // pred_check_branch
      %9 = sbr.rel (0) target = $region5
    $region4: #{tpu_custom_call.1} parent=1 // pred_region
      %s11 = ssub.s32 1024, 1024
      %12 = vsyncadd [#allocation3], %s11
      %s13 = sshll.u32 [#allocation2], 4
      %s14 = int_to_ptr.vmem [resolvable:$true] %s13
      %19 = dma.hbm_to_vmem [thread:$0]  %s0, 1024, %s14, [#allocation3], 128, 128, 8
    $region5: #{tpu_custom_call.1} parent=1 // pred_fallthru
      _
    // Predicated region
    $region6: #{tpu_custom_call.1} parent=1 // pred_check
      _
    $region7: #{tpu_custom_call.1} parent=1 // pred_check_branch
      %21 = sbr.rel (0) target = $region9
    $region8: #{tpu_custom_call.1} parent=1 // pred_region
      %22 = dma.done [#allocation3], 1024
    $region9: #{tpu_custom_call.1} parent=1 // pred_fallthru
      _
    %p23 = scmp.eq.s32.totalorder 0, 0
    // Predicated region
    $region10: #{tpu_custom_call.1} parent=1 // pred_check
      %p24 = pneg %p23
    $region11: #{tpu_custom_call.1} parent=1 // pred_check_branch
      %26 = sbr.rel (%p24) target = $region13
    $region12: #{tpu_custom_call.1} parent=1 // pred_region
      %27 = vst [vmem:[#allocation5] sm:$0xff] 0.0
      %28 = vst [vmem:[#allocation5 + $0x8] sm:$0xff] 0.0
      %29 = vst [vmem:[#allocation5 + $0x10] sm:$0xff] 0.0
      %30 = vst [vmem:[#allocation5 + $0x18] sm:$0xff] 0.0
      %31 = vst [vmem:[#allocation5 + $0x20] sm:$0xff] 0.0
      %32 = vst [vmem:[#allocation5 + $0x28] sm:$0xff] 0.0
      %33 = vst [vmem:[#allocation5 + $0x30] sm:$0xff] 0.0
      %34 = vst [vmem:[#allocation5 + $0x38] sm:$0xff] 0.0
      %35 = vst [vmem:[#allocation5 + $0x40] sm:$0xff] 0.0
      %36 = vst [vmem:[#allocation5 + $0x48] sm:$0xff] 0.0
      %37 = vst [vmem:[#allocation5 + $0x50] sm:$0xff] 0.0
      %38 = vst [vmem:[#allocation5 + $0x58] sm:$0xff] 0.0
      %39 = vst [vmem:[#allocation5 + $0x60] sm:$0xff] 0.0
      %40 = vst [vmem:[#allocation5 + $0x68] sm:$0xff] 0.0
      %41 = vst [vmem:[#allocation5 + $0x70] sm:$0xff] 0.0
      %42 = vst [vmem:[#allocation5 + $0x78] sm:$0xff] 0.0
    $region13: #{tpu_custom_call.1} parent=1 // pred_fallthru
      _
    %v43 = vld [vmem:[#allocation2] sm:$0xff]
    %v44 = vld [vmem:[#allocation2 + $0x8] sm:$0xff]
    %v45 = vld [vmem:[#allocation2 + $0x10] sm:$0xff]
    %v46 = vld [vmem:[#allocation2 + $0x18] sm:$0xff]
    %v47 = vld [vmem:[#allocation2 + $0x20] sm:$0xff]
    %v48 = vld [vmem:[#allocation2 + $0x28] sm:$0xff]
    %v49 = vld [vmem:[#allocation2 + $0x30] sm:$0xff]
    %v50 = vld [vmem:[#allocation2 + $0x38] sm:$0xff]
    %v51 = vld [vmem:[#allocation5] sm:$0xff]
    %v52 = vld [vmem:[#allocation5 + $0x8] sm:$0xff]
    %v53 = vld [vmem:[#allocation5 + $0x10] sm:$0xff]
    %v54 = vld [vmem:[#allocation5 + $0x18] sm:$0xff]
    %v55 = vld [vmem:[#allocation5 + $0x20] sm:$0xff]
    %v56 = vld [vmem:[#allocation5 + $0x28] sm:$0xff]
    %v57 = vld [vmem:[#allocation5 + $0x30] sm:$0xff]
    %v58 = vld [vmem:[#allocation5 + $0x38] sm:$0xff]
    %v59 = vld [vmem:[#allocation5 + $0x40] sm:$0xff]
    %v60 = vld [vmem:[#allocation5 + $0x48] sm:$0xff]
    %v61 = vld [vmem:[#allocation5 + $0x50] sm:$0xff]
    %v62 = vld [vmem:[#allocation5 + $0x58] sm:$0xff]
    %v63 = vld [vmem:[#allocation5 + $0x60] sm:$0xff]
    %v64 = vld [vmem:[#allocation5 + $0x68] sm:$0xff]
    %v65 = vld [vmem:[#allocation5 + $0x70] sm:$0xff]
    %v66 = vld [vmem:[#allocation5 + $0x78] sm:$0xff]
    %67 = vxpose.xlu0.b32.start [1/16] %v43, 128
    %68 = vxpose.xlu0.b32.cont [2/16] %v44, 128
    %69 = vxpose.xlu0.b32.cont [3/16] %v45, 128
    %70 = vxpose.xlu0.b32.cont [4/16] %v46, 128
    %71 = vxpose.xlu0.b32.cont [5/16] %v47, 128
    %72 = vxpose.xlu0.b32.cont [6/16] %v48, 128
    %73 = vxpose.xlu0.b32.cont [7/16] %v49, 128
    %74 = vxpose.xlu0.b32.cont [8/16] %v50, 128
    %75 = vxpose.xlu0.b32.cont [9/16] 0.0, 128
    %76 = vxpose.xlu0.b32.cont [10/16] 0.0, 128
    %77 = vxpose.xlu0.b32.cont [11/16] 0.0, 128
    %78 = vxpose.xlu0.b32.cont [12/16] 0.0, 128
    %79 = vxpose.xlu0.b32.cont [13/16] 0.0, 128
    %80 = vxpose.xlu0.b32.cont [14/16] 0.0, 128
    %81 = vxpose.xlu0.b32.cont [15/16] 0.0, 128
    %82 = vxpose.xlu0.b32.end [16/16] 0.0, 128
    %v83 = vpop.trf.xlu0
    %v84 = vpop.trf.xlu0
    %v85 = vpop.trf.xlu0
    %v86 = vpop.trf.xlu0
    %v87 = vpop.trf.xlu0
    %v88 = vpop.trf.xlu0
    %v89 = vpop.trf.xlu0
    %v90 = vpop.trf.xlu0
    %v91 = vpop.trf.xlu0
    %v92 = vpop.trf.xlu0
    %v93 = vpop.trf.xlu0
    %v94 = vpop.trf.xlu0
    %v95 = vpop.trf.xlu0
    %v96 = vpop.trf.xlu0
    %v97 = vpop.trf.xlu0
    %v98 = vpop.trf.xlu0
    %vm99 = vcmask 523264
    %v101 = vsel %vm99, %v83, 0
    %v104 = vsel %vm99, %v84, 0
    %v107 = vsel %vm99, %v85, 0
    %v110 = vsel %vm99, %v86, 0
    %v113 = vsel %vm99, %v87, 0
    %v116 = vsel %vm99, %v88, 0
    %v119 = vsel %vm99, %v89, 0
    %v122 = vsel %vm99, %v90, 0
    %v125 = vsel %vm99, %v91, 0
    %v128 = vsel %vm99, %v92, 0
    %v131 = vsel %vm99, %v93, 0
    %v134 = vsel %vm99, %v94, 0
    %v137 = vsel %vm99, %v95, 0
    %v140 = vsel %vm99, %v96, 0
    %v143 = vsel %vm99, %v97, 0
    %v146 = vsel %vm99, %v98, 0
    %148 = vmatprep.subr.mxu0 0.0
    %149 = vmatpush1.msra.mxu0 0.0
    %150 = vmatprep.subr.mxu0 0.0
    %151 = vmatpush1.msra.mxu0 0.0
    %152 = vmatprep.subr.mxu0 0.0
    %153 = vmatpush1.msra.mxu0 0.0
    %154 = vmatprep.subr.mxu0 0.0
    %155 = vmatpush1.msra.mxu0 0.0
    %156 = vmatprep.subr.mxu0 0.0
    %157 = vmatpush1.msra.mxu0 0.0
    %158 = vmatprep.subr.mxu0 0.0
    %159 = vmatpush1.msra.mxu0 0.0
    %160 = vmatprep.subr.mxu0 0.0
    %161 = vmatpush1.msra.mxu0 0.0
    %162 = vmatprep.subr.mxu0 0.0
    %163 = vmatpush1.msra.mxu0 0.0
    %164 = vmatprep.subr.mxu0 0.0
    %165 = vmatpush1.msra.mxu0 %v50
    %166 = vmatprep.subr.mxu0 0.0
    %167 = vmatpush1.msra.mxu0 %v49
    %168 = vmatprep.subr.mxu0 0.0
    %169 = vmatpush1.msra.mxu0 %v48
    %170 = vmatprep.subr.mxu0 0.0
    %171 = vmatpush1.msra.mxu0 %v47
    %172 = vmatprep.subr.mxu0 0.0
    %173 = vmatpush1.msra.mxu0 %v46
    %174 = vmatprep.subr.mxu0 0.0
    %175 = vmatpush1.msra.mxu0 %v45
    %176 = vmatprep.subr.mxu0 0.0
    %177 = vmatpush1.msra.mxu0 %v44
    %178 = vmatprep.subr.mxu0 0.0
    %179 = vmatpush1.msra.mxu0 %v43
    %180 = vmatprep.subr.mxu0 0.0
    %181 = vmatpush2.msra.mxu0 0.0
    %182 = vmatprep.subr.mxu0 0.0
    %183 = vmatpush2.msra.mxu0 0.0
    %184 = vmatprep.subr.mxu0 0.0
    %185 = vmatpush2.msra.mxu0 0.0
    %186 = vmatprep.subr.mxu0 0.0
    %187 = vmatpush2.msra.mxu0 0.0
    %188 = vmatprep.subr.mxu0 0.0
    %189 = vmatpush2.msra.mxu0 0.0
    %190 = vmatprep.subr.mxu0 0.0
    %191 = vmatpush2.msra.mxu0 0.0
    %192 = vmatprep.subr.mxu0 0.0
    %193 = vmatpush2.msra.mxu0 0.0
    %194 = vmatprep.subr.mxu0 0.0
    %195 = vmatpush2.msra.mxu0 0.0
    %196 = vmatprep.subr.mxu0 0.0
    %197 = vmatpush2.msra.mxu0 0.0
    %198 = vmatprep.subr.mxu0 0.0
    %199 = vmatpush2.msra.mxu0 0.0
    %200 = vmatprep.subr.mxu0 0.0
    %201 = vmatpush2.msra.mxu0 0.0
    %202 = vmatprep.subr.mxu0 0.0
    %203 = vmatpush2.msra.mxu0 0.0
    %204 = vmatprep.subr.mxu0 0.0
    %205 = vmatpush2.msra.mxu0 0.0
    %206 = vmatprep.subr.mxu0 0.0
    %207 = vmatpush2.msra.mxu0 0.0
    %208 = vmatprep.subr.mxu0 0.0
    %209 = vmatpush2.msra.mxu0 0.0
    %210 = vmatprep.subr.mxu0 0.0
    %211 = vmatpush2.msra.mxu0 0.0
    %212 = vmatprep.mubr.f32.mxu0 0.0
    %213 = vmatmul.mubr.f32.gmra.mxu0 %v101
    %v214 = vpop.f32.mrf.mxu0
    %v215 = vadd.f32 0.0, %v214
    %v216 = vpop.f32.mrf.mxu0
    %217 = vmatprep.mubr.f32.mxu0 0.0
    %218 = vmatmul.mubr.f32.gmra.mxu0 %v104
    %v219 = vpop.f32.mrf.mxu0
    %v220 = vadd.f32 0.0, %v219
    %v221 = vpop.f32.mrf.mxu0
    %222 = vmatprep.mubr.f32.mxu0 0.0
    %223 = vmatmul.mubr.f32.gmra.mxu0 %v107
    %v224 = vpop.f32.mrf.mxu0
    %v225 = vadd.f32 0.0, %v224
    %v226 = vpop.f32.mrf.mxu0
    %227 = vmatprep.mubr.f32.mxu0 0.0
    %228 = vmatmul.mubr.f32.gmra.mxu0 %v110
    %v229 = vpop.f32.mrf.mxu0
    %v230 = vadd.f32 0.0, %v229
    %v231 = vpop.f32.mrf.mxu0
    %232 = vmatprep.mubr.f32.mxu0 0.0
    %233 = vmatmul.mubr.f32.gmra.mxu0 %v113
    %v234 = vpop.f32.mrf.mxu0
    %v235 = vadd.f32 0.0, %v234
    %v236 = vpop.f32.mrf.mxu0
    %237 = vmatprep.mubr.f32.mxu0 0.0
    %238 = vmatmul.mubr.f32.gmra.mxu0 %v116
    %v239 = vpop.f32.mrf.mxu0
    %v240 = vadd.f32 0.0, %v239
    %v241 = vpop.f32.mrf.mxu0
    %242 = vmatprep.mubr.f32.mxu0 0.0
    %243 = vmatmul.mubr.f32.gmra.mxu0 %v119
    %v244 = vpop.f32.mrf.mxu0
    %v245 = vadd.f32 0.0, %v244
    %v246 = vpop.f32.mrf.mxu0
    %247 = vmatprep.mubr.f32.mxu0 0.0
    %248 = vmatmul.mubr.f32.gmra.mxu0 %v122
    %v249 = vpop.f32.mrf.mxu0
    %v250 = vadd.f32 0.0, %v249
    %v251 = vpop.f32.mrf.mxu0
    %252 = vmatprep.mubr.f32.mxu0 0.0
    %253 = vmatmul.mubr.f32.gmra.mxu0 %v125
    %v254 = vpop.f32.mrf.mxu0
    %v255 = vadd.f32 0.0, %v254
    %v256 = vpop.f32.mrf.mxu0
    %257 = vmatprep.mubr.f32.mxu0 0.0
    %258 = vmatmul.mubr.f32.gmra.mxu0 %v128
    %v259 = vpop.f32.mrf.mxu0
    %v260 = vadd.f32 0.0, %v259
    %v261 = vpop.f32.mrf.mxu0
    %262 = vmatprep.mubr.f32.mxu0 0.0
    %263 = vmatmul.mubr.f32.gmra.mxu0 %v131
    %v264 = vpop.f32.mrf.mxu0
    %v265 = vadd.f32 0.0, %v264
    %v266 = vpop.f32.mrf.mxu0
    %267 = vmatprep.mubr.f32.mxu0 0.0
    %268 = vmatmul.mubr.f32.gmra.mxu0 %v134
    %v269 = vpop.f32.mrf.mxu0
    %v270 = vadd.f32 0.0, %v269
    %v271 = vpop.f32.mrf.mxu0
    %272 = vmatprep.mubr.f32.mxu0 0.0
    %273 = vmatmul.mubr.f32.gmra.mxu0 %v137
    %v274 = vpop.f32.mrf.mxu0
    %v275 = vadd.f32 0.0, %v274
    %v276 = vpop.f32.mrf.mxu0
    %277 = vmatprep.mubr.f32.mxu0 0.0
    %278 = vmatmul.mubr.f32.gmra.mxu0 %v140
    %v279 = vpop.f32.mrf.mxu0
    %v280 = vadd.f32 0.0, %v279
    %v281 = vpop.f32.mrf.mxu0
    %282 = vmatprep.mubr.f32.mxu0 0.0
    %283 = vmatmul.mubr.f32.gmra.mxu0 %v143
    %v284 = vpop.f32.mrf.mxu0
    %v285 = vadd.f32 0.0, %v284
    %v286 = vpop.f32.mrf.mxu0
    %287 = vmatprep.mubr.f32.mxu0 0.0
    %288 = vmatmul.mubr.f32.gmra.mxu0 %v146
    %v289 = vpop.f32.mrf.mxu0
    %v290 = vadd.f32 0.0, %v289
    %v291 = vpop.f32.mrf.mxu0
    %292 = vdwg.mxu0
    %v293 = vadd.f32 %v51, %v215
    %v294 = vadd.f32 %v52, %v220
    %v295 = vadd.f32 %v53, %v225
    %v296 = vadd.f32 %v54, %v230
    %v297 = vadd.f32 %v55, %v235
    %v298 = vadd.f32 %v56, %v240
    %v299 = vadd.f32 %v57, %v245
    %v300 = vadd.f32 %v58, %v250
    %v301 = vadd.f32 %v59, %v255
    %v302 = vadd.f32 %v60, %v260
    %v303 = vadd.f32 %v61, %v265
    %v304 = vadd.f32 %v62, %v270
    %v305 = vadd.f32 %v63, %v275
    %v306 = vadd.f32 %v64, %v280
    %v307 = vadd.f32 %v65, %v285
    %v308 = vadd.f32 %v66, %v290
    %309 = vst [vmem:[#allocation5] sm:$0xff] %v293
    %310 = vst [vmem:[#allocation5 + $0x8] sm:$0xff] %v294
    %311 = vst [vmem:[#allocation5 + $0x10] sm:$0xff] %v295
    %312 = vst [vmem:[#allocation5 + $0x18] sm:$0xff] %v296
    %313 = vst [vmem:[#allocation5 + $0x20] sm:$0xff] %v297
    %314 = vst [vmem:[#allocation5 + $0x28] sm:$0xff] %v298
    %315 = vst [vmem:[#allocation5 + $0x30] sm:$0xff] %v299
    %316 = vst [vmem:[#allocation5 + $0x38] sm:$0xff] %v300
    %317 = vst [vmem:[#allocation5 + $0x40] sm:$0xff] %v301
    %318 = vst [vmem:[#allocation5 + $0x48] sm:$0xff] %v302
    %319 = vst [vmem:[#allocation5 + $0x50] sm:$0xff] %v303
    %320 = vst [vmem:[#allocation5 + $0x58] sm:$0xff] %v304
    %321 = vst [vmem:[#allocation5 + $0x60] sm:$0xff] %v305
    %322 = vst [vmem:[#allocation5 + $0x68] sm:$0xff] %v306
    %323 = vst [vmem:[#allocation5 + $0x70] sm:$0xff] %v307
    %324 = vst [vmem:[#allocation5 + $0x78] sm:$0xff] %v308
    // Predicated region
    $region14: #{tpu_custom_call.1} parent=1 // pred_check
      _
    $region15: #{tpu_custom_call.1} parent=1 // pred_check_branch
      %326 = sbr.rel (0) target = $region17
    $region16: #{tpu_custom_call.1} parent=1 // pred_region
      %s328 = ssub.s32 2048, 2048
      %329 = vsyncadd [#allocation4], %s328
      %s330 = sshll.u32 [#allocation5], 4
      %s331 = int_to_ptr.vmem [resolvable:$true] %s330
      %336 = dma.vmem_to_hbm [thread:$0]  %s331, 2048, %s1, [#allocation4], 128, 128, 8
    $region17: #{tpu_custom_call.1} parent=1 // pred_fallthru
      _
    // Predicated region
    $region18: #{tpu_custom_call.1} parent=1 // pred_check
      _
    $region19: #{tpu_custom_call.1} parent=1 // pred_check_branch
      %338 = sbr.rel (0) target = $region21
    $region20: #{tpu_custom_call.1} parent=1 // pred_region
      %339 = dma.done [#allocation4], 2048
    $region21: #{tpu_custom_call.1} parent=1 // pred_fallthru
      _
    %340 = vsyncpa [#allocation3], 1
    %341 = vsyncpa [#allocation4], 1

</llo_original>
